<compile_context>
chip_gen: v7x
topology: tpu7x:2x2x1
jax: 0.10.0
libtpu: 0.0.40
codegen_flags: <defaults>
</compile_context>

<pallas_src>
import jax
import jax.numpy as jnp
from jax.experimental import pallas as pl
from jax.experimental.pallas import tpu as pltpu


def decoder_kernel(x_ref, w1_ref, b1_ref, w2_ref, b2_ref, w3_ref, b3_ref, o_ref):
    """One (features, tile_b) column-tile of the 3-layer MLP, batch on the lane axis.

    x_ref : (K,  tb)   streamed input columns (batch elements on lanes)
    w*_ref: (out, in)  resident weights (PyTorch nn.Linear orientation)
    b*_ref: (out, 1)   resident biases (broadcast along lanes)
    o_ref : (N,  tb)   lane-dense output tile
    """
    cdt = w1_ref.dtype                       # MXU operand dtype (f32 or bf16)
    x = x_ref[...].astype(cdt)               # (K, tb)
    # Layer 1: Linear(K -> 32) + ReLU
    h = jnp.dot(w1_ref[...], x, preferred_element_type=jnp.float32)       # (32, tb) f32
    h = jnp.maximum(h + b1_ref[...], 0.0)
    # Layer 2: Linear(32 -> 32) + ReLU
    h = jnp.dot(w2_ref[...], h.astype(cdt), preferred_element_type=jnp.float32)
    h = jnp.maximum(h + b2_ref[...], 0.0)
    # Layer 3: Linear(32 -> N) + Sigmoid (elementwise stays f32)
    h = jnp.dot(w3_ref[...], h.astype(cdt), preferred_element_type=jnp.float32)
    o_ref[...] = jax.nn.sigmoid(h + b3_ref[...]).astype(o_ref.dtype)


def decoder_forward(x, params, *, tile_b=8192, out_dtype=jnp.float32,
                    x_transposed=False, return_transposed=False):
    """Decoder forward.

    x: (B, K) by default (PyTorch layout), or (K, B) if x_transposed=True.
    Returns (B, N) by default, or (N, B) if return_transposed=True (skips one
    layout-plumbing transpose for consumers that work batch-in-lanes).
    """
    w1, b1, w2, b2, w3, b3 = (params[k] for k in ("w1", "b1", "w2", "b2", "w3", "b3"))
    x_t = x if x_transposed else x.T                  # (K, B): single cheap layout pass
    K, B = x_t.shape
    H1, H2, N = w1.shape[0], w2.shape[0], w3.shape[0]

    # Batch tile on the lane axis: multiple of 128, or the full batch extent if it
    # fits in one block (a full-extent block dim may be any size).
    if B <= tile_b:
        tb, steps = B, 1
    else:
        tb = max(128, (tile_b // 128) * 128)
        steps = pl.cdiv(B, tb)

    def stream(shape):       # follows the batch grid (lane axis); partial last block masked
        return pl.BlockSpec(shape, lambda i: (0, i))

    def resident(shape):     # fetched once, lives in VMEM for the whole call
        return pl.BlockSpec(shape, lambda i: (0, 0))

    weight_bytes = sum(int(a.size) * a.dtype.itemsize for a in (w1, b1, w2, b2, w3, b3))
    cost = pl.CostEstimate(
        flops=2 * B * (K * H1 + H1 * H2 + H2 * N),
        transcendentals=B * N,                                   # sigmoid
        bytes_accessed=B * K * x.dtype.itemsize
        + B * N * jnp.dtype(out_dtype).itemsize + weight_bytes,
    )

    out_t = pl.pallas_call(
        decoder_kernel,
        out_shape=jax.ShapeDtypeStruct((N, B), out_dtype),
        grid=(steps,),
        in_specs=[
            stream((K, tb)),        # x (batch columns streamed)
            resident((H1, K)),      # w1 (resident)
            resident((H1, 1)),      # b1
            resident((H2, H1)),     # w2
            resident((H2, 1)),      # b2
            resident((N, H2)),      # w3
            resident((N, 1)),       # b3
        ],
        out_specs=stream((N, tb)),
        compiler_params=pltpu.CompilerParams(
            # TODO(synk): on v7x, if profiling shows a single busy TensorCore,
            # switch this axis to pltpu.CORE_PARALLEL (or split via core_map).
            dimension_semantics=("parallel",),
            vmem_limit_bytes=32 * 1024 * 1024,   # far above the ~5 MiB actually needed
        ),
        cost_estimate=cost,
    )(x_t, w1, b1, w2, b2, w3, b3)

    return out_t if return_transposed else out_t.T


def init_params(key, lower_shape, input_shape, hidden=32, weight_dtype=jnp.float32):
    """PyTorch-style init (uniform +/- 1/sqrt(fan_in)).  Weights kept in nn.Linear's
    (out_features, in_features) orientation (what the batch-in-lanes kernel wants);
    biases (out_features, 1), f32.  bf16 weights are a native MXU operand dtype on
    v5e/v6e/v7x and halve resident-weight DMA/VMEM."""
    ks = jax.random.split(key, 6)

    def linear(kw, kb, fan_in, fan_out):
        bound = 1.0 / float(fan_in) ** 0.5
        w = jax.random.uniform(kw, (fan_out, fan_in), jnp.float32, -bound, bound)
        b = jax.random.uniform(kb, (fan_out, 1), jnp.float32, -bound, bound)
        return w.astype(weight_dtype), b

    w1, b1 = linear(ks[0], ks[1], lower_shape, hidden)
    w2, b2 = linear(ks[2], ks[3], hidden, hidden)
    w3, b3 = linear(ks[4], ks[5], hidden, input_shape)
    return {"w1": w1, "b1": b1, "w2": w2, "b2": b2, "w3": w3, "b3": b3}


def decoder_ref(x, params):
    """Pure-JAX reference mirroring the kernel's dtype policy (f32 accumulation,
    f32 elementwise).  x: (B, K) -> (B, N)."""
    cdt = params["w1"].dtype
    h = x.T.astype(cdt)                                                           # (K, B)
    h = jnp.dot(params["w1"], h, preferred_element_type=jnp.float32) + params["b1"]
    h = jnp.maximum(h, 0.0)
    h = jnp.dot(params["w2"], h.astype(cdt), preferred_element_type=jnp.float32) + params["b2"]
    h = jnp.maximum(h, 0.0)
    h = jnp.dot(params["w3"], h.astype(cdt), preferred_element_type=jnp.float32) + params["b3"]
    return jax.nn.sigmoid(h).T


if __name__ == "__main__":
    lower_shape, input_shape, hidden = 8, 16, 32
    key = jax.random.PRNGKey(0)
    k_x1, k_x2, k_p = jax.random.split(key, 3)

    # 1) Tiny batch (single full-extent block), f32 weights -> strict tolerance.
    params = init_params(k_p, lower_shape, input_shape, hidden)
    x_small = jax.random.normal(k_x1, (8, lower_shape), jnp.float32)
    out = jax.block_until_ready(decoder_forward(x_small, params))
    assert out.shape == (8, input_shape)
    assert jnp.allclose(out, decoder_ref(x_small, params), atol=1e-5, rtol=1e-5), \
        "f32 small-batch mismatch"

    # 2) Non-tile-aligned batch with the default big tile (one 1000-lane block).
    x_big = jax.random.normal(k_x2, (1000, lower_shape), jnp.float32)
    out_big = jax.block_until_ready(decoder_forward(x_big, params))
    ref_big = decoder_ref(x_big, params)
    assert out_big.shape == (1000, input_shape)
    assert jnp.allclose(out_big, ref_big, atol=1e-5, rtol=1e-5), "f32 default-tile mismatch"

    # 3) Multi-step grid with a masked partial last block (1000 = 3*256 + 232).
    out_tiled = jax.block_until_ready(decoder_forward(x_big, params, tile_b=256))
    assert jnp.allclose(out_tiled, ref_big, atol=1e-5, rtol=1e-5), "partial-block mismatch"

    # 4) Fully optimized path: bf16 weights, bf16 output, transposed I/O (no wrapper
    #    transposes).  Reference uses the same bf16 weights, so only matmul/output
    #    rounding differs -> loose tolerance.
    params_bf16 = init_params(k_p, lower_shape, input_shape, hidden,
                              weight_dtype=jnp.bfloat16)
    out_bf16 = jax.block_until_ready(
        decoder_forward(x_big.T, params_bf16, tile_b=256, out_dtype=jnp.bfloat16,
                        x_transposed=True, return_transposed=True))
    ref_bf16 = decoder_ref(x_big, params_bf16)
    assert out_bf16.shape == (input_shape, 1000)
    assert jnp.allclose(out_bf16.astype(jnp.float32).T, ref_bf16, atol=2e-2, rtol=2e-2), \
        "bf16 mismatch"

    print("KERNEL_OK")
</pallas_src>

<mosaic_0001>
module attributes {stable_mosaic.version = 11 : i64} {
  func.func @decoder_kernel(%arg0: i32, %arg1: memref<8x8xf32, #tpu.memory_space<vmem>>, %arg2: memref<32x8xf32, #tpu.memory_space<vmem>>, %arg3: memref<32x1xf32, #tpu.memory_space<vmem>>, %arg4: memref<32x32xf32, #tpu.memory_space<vmem>>, %arg5: memref<32x1xf32, #tpu.memory_space<vmem>>, %arg6: memref<16x32xf32, #tpu.memory_space<vmem>>, %arg7: memref<16x1xf32, #tpu.memory_space<vmem>>, %arg8: memref<16x8xf32, #tpu.memory_space<vmem>>) attributes {dimension_semantics = [#tpu.dimension_semantics<parallel>], iteration_bounds = array<i64: 1>, scalar_prefetch = 0 : i64, scratch_operands = 0 : i64, tpu.core_type = #tpu.core_type<tc>, window_params = [{transform_indices = @transform_0, window_bounds = array<i64: 8, 8>}, {pipeline_mode = #tpu.pipeline_mode<synchronous>, transform_indices = @transform_1, window_bounds = array<i64: 32, 8>}, {pipeline_mode = #tpu.pipeline_mode<synchronous>, transform_indices = @transform_2, window_bounds = array<i64: 32, 1>}, {pipeline_mode = #tpu.pipeline_mode<synchronous>, transform_indices = @transform_3, window_bounds = array<i64: 32, 32>}, {pipeline_mode = #tpu.pipeline_mode<synchronous>, transform_indices = @transform_4, window_bounds = array<i64: 32, 1>}, {pipeline_mode = #tpu.pipeline_mode<synchronous>, transform_indices = @transform_5, window_bounds = array<i64: 16, 32>}, {pipeline_mode = #tpu.pipeline_mode<synchronous>, transform_indices = @transform_6, window_bounds = array<i64: 16, 1>}, {transform_indices = @transform_7, window_bounds = array<i64: 16, 8>}]} {
    %c0 = arith.constant 0 : index
    %c0_0 = arith.constant 0 : index
    %0 = vector.load %arg1[%c0, %c0_0] : memref<8x8xf32, #tpu.memory_space<vmem>>, vector<8x8xf32>
    %c0_1 = arith.constant 0 : index
    %c0_2 = arith.constant 0 : index
    %1 = vector.load %arg2[%c0_1, %c0_2] : memref<32x8xf32, #tpu.memory_space<vmem>>, vector<32x8xf32>
    %cst = arith.constant dense<0.000000e+00> : vector<32x8xf32>
    %2 = tpu.matmul %1, %0, %cst {dimension_numbers = #tpu.dot_dimension_numbers<[1], [0], [0], [1], [0, 0, 1, 1], [], []>} : vector<32x8xf32>, vector<8x8xf32>, vector<32x8xf32> -> vector<32x8xf32>
    %c0_3 = arith.constant 0 : index
    %c0_4 = arith.constant 0 : index
    %3 = vector.load %arg3[%c0_3, %c0_4] : memref<32x1xf32, #tpu.memory_space<vmem>>, vector<32x1xf32>
    %4 = vector.broadcast %3 : vector<32x1xf32> to vector<32x8xf32>
    %5 = arith.addf %2, %4 : vector<32x8xf32>
    %cst_5 = arith.constant 0.000000e+00 : f32
    %6 = vector.broadcast %cst_5 : f32 to vector<32x8xf32>
    %7 = arith.maximumf %5, %6 : vector<32x8xf32>
    %c0_6 = arith.constant 0 : index
    %c0_7 = arith.constant 0 : index
    %8 = vector.load %arg4[%c0_6, %c0_7] : memref<32x32xf32, #tpu.memory_space<vmem>>, vector<32x32xf32>
    %cst_8 = arith.constant dense<0.000000e+00> : vector<32x8xf32>
    %9 = tpu.matmul %8, %7, %cst_8 {dimension_numbers = #tpu.dot_dimension_numbers<[1], [0], [0], [1], [0, 0, 1, 1], [], []>} : vector<32x32xf32>, vector<32x8xf32>, vector<32x8xf32> -> vector<32x8xf32>
    %c0_9 = arith.constant 0 : index
    %c0_10 = arith.constant 0 : index
    %10 = vector.load %arg5[%c0_9, %c0_10] : memref<32x1xf32, #tpu.memory_space<vmem>>, vector<32x1xf32>
    %11 = vector.broadcast %10 : vector<32x1xf32> to vector<32x8xf32>
    %12 = arith.addf %9, %11 : vector<32x8xf32>
    %cst_11 = arith.constant 0.000000e+00 : f32
    %13 = vector.broadcast %cst_11 : f32 to vector<32x8xf32>
    %14 = arith.maximumf %12, %13 : vector<32x8xf32>
    %c0_12 = arith.constant 0 : index
    %c0_13 = arith.constant 0 : index
    %15 = vector.load %arg6[%c0_12, %c0_13] : memref<16x32xf32, #tpu.memory_space<vmem>>, vector<16x32xf32>
    %cst_14 = arith.constant dense<0.000000e+00> : vector<16x8xf32>
    %16 = tpu.matmul %15, %14, %cst_14 {dimension_numbers = #tpu.dot_dimension_numbers<[1], [0], [0], [1], [0, 0, 1, 1], [], []>} : vector<16x32xf32>, vector<32x8xf32>, vector<16x8xf32> -> vector<16x8xf32>
    %c0_15 = arith.constant 0 : index
    %c0_16 = arith.constant 0 : index
    %17 = vector.load %arg7[%c0_15, %c0_16] : memref<16x1xf32, #tpu.memory_space<vmem>>, vector<16x1xf32>
    %18 = vector.broadcast %17 : vector<16x1xf32> to vector<16x8xf32>
    %19 = arith.addf %16, %18 : vector<16x8xf32>
    %20 = arith.negf %19 : vector<16x8xf32>
    %21 = math.exp %20 : vector<16x8xf32>
    %cst_17 = arith.constant 1.000000e+00 : f32
    %22 = vector.broadcast %cst_17 : f32 to vector<16x8xf32>
    %23 = arith.addf %22, %21 : vector<16x8xf32>
    %24 = arith.divf %22, %23 : vector<16x8xf32>
    %c0_18 = arith.constant 0 : index
    %c0_19 = arith.constant 0 : index
    %25 = vector.load %arg8[%c0_18, %c0_19] : memref<16x8xf32, #tpu.memory_space<vmem>>, vector<16x8xf32>
    tpu.vector_store %arg8[%c0_18, %c0_19], %24 {strides = array<i32>} : memref<16x8xf32, #tpu.memory_space<vmem>>, vector<16x8xf32>,
    return
  }
  func.func @transform_0(%arg0: i32) -> (i32, i32) {
    %c0_i32 = arith.constant 0 : i32
    %c0_i32_0 = arith.constant 0 : i32
    return %c0_i32, %arg0 : i32, i32
  }
  func.func @transform_1(%arg0: i32) -> (i32, i32) {
    %c0_i32 = arith.constant 0 : i32
    %c0_i32_0 = arith.constant 0 : i32
    %c0_i32_1 = arith.constant 0 : i32
    return %c0_i32, %c0_i32_0 : i32, i32
  }
  func.func @transform_2(%arg0: i32) -> (i32, i32) {
    %c0_i32 = arith.constant 0 : i32
    %c0_i32_0 = arith.constant 0 : i32
    %c0_i32_1 = arith.constant 0 : i32
    return %c0_i32, %c0_i32_0 : i32, i32
  }
  func.func @transform_3(%arg0: i32) -> (i32, i32) {
    %c0_i32 = arith.constant 0 : i32
    %c0_i32_0 = arith.constant 0 : i32
    %c0_i32_1 = arith.constant 0 : i32
    return %c0_i32, %c0_i32_0 : i32, i32
  }
  func.func @transform_4(%arg0: i32) -> (i32, i32) {
    %c0_i32 = arith.constant 0 : i32
    %c0_i32_0 = arith.constant 0 : i32
    %c0_i32_1 = arith.constant 0 : i32
    return %c0_i32, %c0_i32_0 : i32, i32
  }
  func.func @transform_5(%arg0: i32) -> (i32, i32) {
    %c0_i32 = arith.constant 0 : i32
    %c0_i32_0 = arith.constant 0 : i32
    %c0_i32_1 = arith.constant 0 : i32
    return %c0_i32, %c0_i32_0 : i32, i32
  }
  func.func @transform_6(%arg0: i32) -> (i32, i32) {
    %c0_i32 = arith.constant 0 : i32
    %c0_i32_0 = arith.constant 0 : i32
    %c0_i32_1 = arith.constant 0 : i32
    return %c0_i32, %c0_i32_0 : i32, i32
  }
  func.func @transform_7(%arg0: i32) -> (i32, i32) {
    %c0_i32 = arith.constant 0 : i32
    %c0_i32_0 = arith.constant 0 : i32
    return %c0_i32, %arg0 : i32, i32
  }
}

</mosaic_0001>

<llo_original>
// kernel: tpu_custom_call.1
$region0: #{tpu_custom_call.1}
  #allocation0 [shape = 'u32[]', space=smem, size = 0x4, offset = 0x4, fixed_abs, tag = 'smem constant byte address 0x4 - core index']
  #allocation1 [shape = 'u32[144,128]{1,0:T(1,128)}', space=vmem, size = 0x12000, scoped, tag = 'internal scratch']
  %s0 = inlined_call_operand.vmem [shape: f32[8,8], index: 0, kind: input, shape index: {}]
  %s1 = inlined_call_operand.vmem [shape: f32[32,8], index: 1, kind: input, shape index: {}]
  %s2 = inlined_call_operand.vmem [shape: f32[32,1], index: 2, kind: input, shape index: {}]
  %s3 = inlined_call_operand.vmem [shape: f32[32,32], index: 3, kind: input, shape index: {}]
  %s4 = inlined_call_operand.vmem [shape: f32[32,1], index: 4, kind: input, shape index: {}]
  %s5 = inlined_call_operand.vmem [shape: f32[16,32], index: 5, kind: input, shape index: {}]
  %s6 = inlined_call_operand.vmem [shape: f32[16,1], index: 6, kind: input, shape index: {}]
  %s7 = inlined_call_operand.vmem [shape: f32[16,8], index: 7, kind: output, shape index: {}]
  %s8 = sld [smem:[#allocation0]]
  $region38: #{tpu_custom_call.1} parent=0
    _
  %s10 = ssub.s32 1, %s8
  %s11 = scalar_select 0, %s10, %s8
  // Predicated region
  $region2: #{tpu_custom_call.1} parent=0 // pred_check
    _
  $region3: #{tpu_custom_call.1} parent=0 // pred_check_branch
    %13 = sbr.rel (0) target = $region5
  $region4: #{tpu_custom_call.1} parent=0 // pred_region
    _
  $region5: #{tpu_custom_call.1} parent=0 // pred_fallthru
    _
  // Predicated region
  $region6: #{tpu_custom_call.1} parent=0 // pred_check
    _
  $region7: #{tpu_custom_call.1} parent=0 // pred_check_branch
    %15 = sbr.rel (0) target = $region9
  $region8: #{tpu_custom_call.1} parent=0 // pred_region
    _
  $region9: #{tpu_custom_call.1} parent=0 // pred_fallthru
    _
  // Predicated region
  $region10: #{tpu_custom_call.1} parent=0 // pred_check
    _
  $region11: #{tpu_custom_call.1} parent=0 // pred_check_branch
    %17 = sbr.rel (0) target = $region13
  $region12: #{tpu_custom_call.1} parent=0 // pred_region
    _
  $region13: #{tpu_custom_call.1} parent=0 // pred_fallthru
    _
  // Predicated region
  $region14: #{tpu_custom_call.1} parent=0 // pred_check
    _
  $region15: #{tpu_custom_call.1} parent=0 // pred_check_branch
    %19 = sbr.rel (0) target = $region17
  $region16: #{tpu_custom_call.1} parent=0 // pred_region
    _
  $region17: #{tpu_custom_call.1} parent=0 // pred_fallthru
    _
  // Predicated region
  $region18: #{tpu_custom_call.1} parent=0 // pred_check
    _
  $region19: #{tpu_custom_call.1} parent=0 // pred_check_branch
    %21 = sbr.rel (0) target = $region21
  $region20: #{tpu_custom_call.1} parent=0 // pred_region
    _
  $region21: #{tpu_custom_call.1} parent=0 // pred_fallthru
    _
  // Predicated region
  $region22: #{tpu_custom_call.1} parent=0 // pred_check
    _
  $region23: #{tpu_custom_call.1} parent=0 // pred_check_branch
    %23 = sbr.rel (0) target = $region25
  $region24: #{tpu_custom_call.1} parent=0 // pred_region
    _
  $region25: #{tpu_custom_call.1} parent=0 // pred_fallthru
    _
  // Predicated region
  $region26: #{tpu_custom_call.1} parent=0 // pred_check
    _
  $region27: #{tpu_custom_call.1} parent=0 // pred_check_branch
    %25 = sbr.rel (0) target = $region29
  $region28: #{tpu_custom_call.1} parent=0 // pred_region
    _
  $region29: #{tpu_custom_call.1} parent=0 // pred_fallthru
    _
  %v26 = vld [vmem:[%s0] sm:$0xff]
  %v27 = vld [vmem:[%s1] sm:$0xff]
  %v28 = vld [vmem:[%s1 + $0x8] sm:$0xff]
  %v29 = vld [vmem:[%s1 + $0x10] sm:$0xff]
  %v30 = vld [vmem:[%s1 + $0x18] sm:$0xff]
  %v31 = vld [vmem:[%s2] sm:$0xff]
  %v32 = vld [vmem:[%s2 + $0x8] sm:$0xff]
  %v33 = vld [vmem:[%s2 + $0x10] sm:$0xff]
  %v34 = vld [vmem:[%s2 + $0x18] sm:$0xff]
  %36 = vset.pattern.permute.xlu0 0
  %37 = vperm.xlu0 %36, %v31
  %v38 = vpop.permute.xlu0 %37
  %41 = vset.pattern.permute.xlu0 0
  %42 = vperm.xlu0 %41, %v32
  %v43 = vpop.permute.xlu0 %42
  %46 = vset.pattern.permute.xlu0 0
  %47 = vperm.xlu0 %46, %v33
  %v48 = vpop.permute.xlu0 %47
  %51 = vset.pattern.permute.xlu0 0
  %52 = vperm.xlu0 %51, %v34
  %v53 = vpop.permute.xlu0 %52
  %vm55 = vcmask 64512
  %v57 = vsel %vm55, %v27, 0
  %v60 = vsel %vm55, %v28, 0
  %v63 = vsel %vm55, %v29, 0
  %v66 = vsel %vm55, %v30, 0
  %68 = vmatprep.subr.mxu0 0.0
  %69 = vmatpush1.msra.mxu0 %v26
  %70 = vmatprep.subr.mxu0 0.0
  %71 = vmatpush1.msra.mxu0 0.0
  %72 = vmatprep.subr.mxu0 0.0
  %73 = vmatpush1.msra.mxu0 0.0
  %74 = vmatprep.subr.mxu0 0.0
  %75 = vmatpush1.msra.mxu0 0.0
  %76 = vmatprep.subr.mxu0 0.0
  %77 = vmatpush1.msra.mxu0 0.0
  %78 = vmatprep.subr.mxu0 0.0
  %79 = vmatpush1.msra.mxu0 0.0
  %80 = vmatprep.subr.mxu0 0.0
  %81 = vmatpush1.msra.mxu0 0.0
  %82 = vmatprep.subr.mxu0 0.0
  %83 = vmatpush1.msra.mxu0 0.0
  %84 = vmatprep.subr.mxu0 0.0
  %85 = vmatpush1.msra.mxu0 0.0
  %86 = vmatprep.subr.mxu0 0.0
  %87 = vmatpush1.msra.mxu0 0.0
  %88 = vmatprep.subr.mxu0 0.0
  %89 = vmatpush1.msra.mxu0 0.0
  %90 = vmatprep.subr.mxu0 0.0
  %91 = vmatpush1.msra.mxu0 0.0
  %92 = vmatprep.subr.mxu0 0.0
  %93 = vmatpush1.msra.mxu0 0.0
  %94 = vmatprep.subr.mxu0 0.0
  %95 = vmatpush1.msra.mxu0 0.0
  %96 = vmatprep.subr.mxu0 0.0
  %97 = vmatpush1.msra.mxu0 0.0
  %98 = vmatprep.subr.mxu0 0.0
  %99 = vmatpush1.msra.mxu0 0.0
  %100 = vmatprep.subr.mxu0 0.0
  %101 = vmatpush1.msra.mxu0 0.0
  %102 = vmatprep.subr.mxu0 0.0
  %103 = vmatpush1.msra.mxu0 0.0
  %104 = vmatprep.subr.mxu0 0.0
  %105 = vmatpush1.msra.mxu0 0.0
  %106 = vmatprep.subr.mxu0 0.0
  %107 = vmatpush1.msra.mxu0 0.0
  %108 = vmatprep.subr.mxu0 0.0
  %109 = vmatpush1.msra.mxu0 0.0
  %110 = vmatprep.subr.mxu0 0.0
  %111 = vmatpush1.msra.mxu0 0.0
  %112 = vmatprep.subr.mxu0 0.0
  %113 = vmatpush1.msra.mxu0 0.0
  %114 = vmatprep.subr.mxu0 0.0
  %115 = vmatpush1.msra.mxu0 0.0
  %116 = vmatprep.subr.mxu0 0.0
  %117 = vmatpush1.msra.mxu0 0.0
  %118 = vmatprep.subr.mxu0 0.0
  %119 = vmatpush1.msra.mxu0 0.0
  %120 = vmatprep.subr.mxu0 0.0
  %121 = vmatpush1.msra.mxu0 0.0
  %122 = vmatprep.subr.mxu0 0.0
  %123 = vmatpush1.msra.mxu0 0.0
  %124 = vmatprep.subr.mxu0 0.0
  %125 = vmatpush1.msra.mxu0 0.0
  %126 = vmatprep.subr.mxu0 0.0
  %127 = vmatpush1.msra.mxu0 0.0
  %128 = vmatprep.subr.mxu0 0.0
  %129 = vmatpush1.msra.mxu0 0.0
  %130 = vmatprep.subr.mxu0 0.0
  %131 = vmatpush1.msra.mxu0 0.0
  %132 = vmatprep.mubr.f32.mxu0 0.0
  %133 = vmatmul.mubr.f32.gmra.mrb[0].mxu0 %v57
  %v134 = vpop.f32.mrb[0].mxu0
  %v135 = vadd.f32 %v38, %v134
  %v136 = vpop.f32.mrb[0].mxu0
  %137 = vmatprep.mubr.f32.mxu0 0.0
  %138 = vmatmul.mubr.f32.gmra.mrb[0].mxu0 %v60
  %v139 = vpop.f32.mrb[0].mxu0
  %v140 = vadd.f32 %v43, %v139
  %v141 = vpop.f32.mrb[0].mxu0
  %142 = vmatprep.mubr.f32.mxu0 0.0
  %143 = vmatmul.mubr.f32.gmra.mrb[0].mxu0 %v63
  %v144 = vpop.f32.mrb[0].mxu0
  %v145 = vadd.f32 %v48, %v144
  %v146 = vpop.f32.mrb[0].mxu0
  %147 = vmatprep.mubr.f32.mxu0 0.0
  %148 = vmatmul.mubr.f32.gmra.mrb[0].mxu0 %v66
  %v149 = vpop.f32.mrb[0].mxu0
  %v150 = vadd.f32 %v53, %v149
  %v151 = vpop.f32.mrb[0].mxu0
  %152 = vdwg.mxu0
  %v153 = vmax.f32 %v135, 0.0
  %v154 = vmax.f32 %v140, 0.0
  %v155 = vmax.f32 %v145, 0.0
  %v156 = vmax.f32 %v150, 0.0
  %v157 = vld [vmem:[%s3] sm:$0xff]
  %v158 = vld [vmem:[%s3 + $0x8] sm:$0xff]
  %v159 = vld [vmem:[%s3 + $0x10] sm:$0xff]
  %v160 = vld [vmem:[%s3 + $0x18] sm:$0xff]
  %v161 = vld [vmem:[%s4] sm:$0xff]
  %v162 = vld [vmem:[%s4 + $0x8] sm:$0xff]
  %v163 = vld [vmem:[%s4 + $0x10] sm:$0xff]
  %v164 = vld [vmem:[%s4 + $0x18] sm:$0xff]
  %166 = vset.pattern.permute.xlu0 0
  %167 = vperm.xlu0 %166, %v161
  %v168 = vpop.permute.xlu0 %167
  %171 = vset.pattern.permute.xlu0 0
  %172 = vperm.xlu0 %171, %v162
  %v173 = vpop.permute.xlu0 %172
  %176 = vset.pattern.permute.xlu0 0
  %177 = vperm.xlu0 %176, %v163
  %v178 = vpop.permute.xlu0 %177
  %181 = vset.pattern.permute.xlu0 0
  %182 = vperm.xlu0 %181, %v164
  %v183 = vpop.permute.xlu0 %182
  %vm185 = vcmask 261120
  %v187 = vsel %vm185, %v157, 0
  %v190 = vsel %vm185, %v158, 0
  %v193 = vsel %vm185, %v159, 0
  %v196 = vsel %vm185, %v160, 0
  %198 = vmatprep.subr.mxu0 0.0
  %199 = vmatpush1.msra.mxu0 %v153
  %200 = vmatprep.subr.mxu0 0.0
  %201 = vmatpush1.msra.mxu0 %v154
  %202 = vmatprep.subr.mxu0 0.0
  %203 = vmatpush1.msra.mxu0 %v155
  %204 = vmatprep.subr.mxu0 0.0
  %205 = vmatpush1.msra.mxu0 %v156
  %206 = vmatprep.subr.mxu0 0.0
  %207 = vmatpush1.msra.mxu0 0.0
  %208 = vmatprep.subr.mxu0 0.0
  %209 = vmatpush1.msra.mxu0 0.0
  %210 = vmatprep.subr.mxu0 0.0
  %211 = vmatpush1.msra.mxu0 0.0
  %212 = vmatprep.subr.mxu0 0.0
  %213 = vmatpush1.msra.mxu0 0.0
  %214 = vmatprep.subr.mxu0 0.0
  %215 = vmatpush1.msra.mxu0 0.0
  %216 = vmatprep.subr.mxu0 0.0
  %217 = vmatpush1.msra.mxu0 0.0
  %218 = vmatprep.subr.mxu0 0.0
  %219 = vmatpush1.msra.mxu0 0.0
  %220 = vmatprep.subr.mxu0 0.0
  %221 = vmatpush1.msra.mxu0 0.0
  %222 = vmatprep.subr.mxu0 0.0
  %223 = vmatpush1.msra.mxu0 0.0
  %224 = vmatprep.subr.mxu0 0.0
  %225 = vmatpush1.msra.mxu0 0.0
  %226 = vmatprep.subr.mxu0 0.0
  %227 = vmatpush1.msra.mxu0 0.0
  %228 = vmatprep.subr.mxu0 0.0
  %229 = vmatpush1.msra.mxu0 0.0
  %230 = vmatprep.subr.mxu0 0.0
  %231 = vmatpush1.msra.mxu0 0.0
  %232 = vmatprep.subr.mxu0 0.0
  %233 = vmatpush1.msra.mxu0 0.0
  %234 = vmatprep.subr.mxu0 0.0
  %235 = vmatpush1.msra.mxu0 0.0
  %236 = vmatprep.subr.mxu0 0.0
  %237 = vmatpush1.msra.mxu0 0.0
  %238 = vmatprep.subr.mxu0 0.0
  %239 = vmatpush1.msra.mxu0 0.0
  %240 = vmatprep.subr.mxu0 0.0
  %241 = vmatpush1.msra.mxu0 0.0
  %242 = vmatprep.subr.mxu0 0.0
  %243 = vmatpush1.msra.mxu0 0.0
  %244 = vmatprep.subr.mxu0 0.0
  %245 = vmatpush1.msra.mxu0 0.0
  %246 = vmatprep.subr.mxu0 0.0
  %247 = vmatpush1.msra.mxu0 0.0
  %248 = vmatprep.subr.mxu0 0.0
  %249 = vmatpush1.msra.mxu0 0.0
  %250 = vmatprep.subr.mxu0 0.0
  %251 = vmatpush1.msra.mxu0 0.0
  %252 = vmatprep.subr.mxu0 0.0
  %253 = vmatpush1.msra.mxu0 0.0
  %254 = vmatprep.subr.mxu0 0.0
  %255 = vmatpush1.msra.mxu0 0.0
  %256 = vmatprep.subr.mxu0 0.0
  %257 = vmatpush1.msra.mxu0 0.0
  %258 = vmatprep.subr.mxu0 0.0
  %259 = vmatpush1.msra.mxu0 0.0
  %260 = vmatprep.subr.mxu0 0.0
  %261 = vmatpush1.msra.mxu0 0.0
  %262 = vmatprep.mubr.f32.mxu0 0.0
  %263 = vmatmul.mubr.f32.gmra.mrb[0].mxu0 %v187
  %v264 = vpop.f32.mrb[0].mxu0
  %v265 = vadd.f32 %v168, %v264
  %v266 = vpop.f32.mrb[0].mxu0
  %267 = vmatprep.mubr.f32.mxu0 0.0
  %268 = vmatmul.mubr.f32.gmra.mrb[0].mxu0 %v190
  %v269 = vpop.f32.mrb[0].mxu0
  %v270 = vadd.f32 %v173, %v269
  %v271 = vpop.f32.mrb[0].mxu0
  %272 = vmatprep.mubr.f32.mxu0 0.0
  %273 = vmatmul.mubr.f32.gmra.mrb[0].mxu0 %v193
  %v274 = vpop.f32.mrb[0].mxu0
  %v275 = vadd.f32 %v178, %v274
  %v276 = vpop.f32.mrb[0].mxu0
  %277 = vmatprep.mubr.f32.mxu0 0.0
  %278 = vmatmul.mubr.f32.gmra.mrb[0].mxu0 %v196
  %v279 = vpop.f32.mrb[0].mxu0
  %v280 = vadd.f32 %v183, %v279
  %v281 = vpop.f32.mrb[0].mxu0
  %282 = vdwg.mxu0
  %v283 = vmax.f32 %v265, 0.0
  %v284 = vmax.f32 %v270, 0.0
  %v285 = vmax.f32 %v275, 0.0
  %v286 = vmax.f32 %v280, 0.0
  %v287 = vld [vmem:[%s5] sm:$0xff]
  %v288 = vld [vmem:[%s5 + $0x8] sm:$0xff]
  %v289 = vld [vmem:[%s6] sm:$0xff]
  %v290 = vld [vmem:[%s6 + $0x8] sm:$0xff]
  %292 = vset.pattern.permute.xlu0 0
  %293 = vperm.xlu0 %292, %v289
  %v294 = vpop.permute.xlu0 %293
  %297 = vset.pattern.permute.xlu0 0
  %298 = vperm.xlu0 %297, %v290
  %v299 = vpop.permute.xlu0 %298
  %v302 = vsel %vm185, %v287, 0
  %v305 = vsel %vm185, %v288, 0
  %307 = vmatprep.subr.mxu0 0.0
  %308 = vmatpush1.msra.mxu0 %v283
  %309 = vmatprep.subr.mxu0 0.0
  %310 = vmatpush1.msra.mxu0 %v284
  %311 = vmatprep.subr.mxu0 0.0
  %312 = vmatpush1.msra.mxu0 %v285
  %313 = vmatprep.subr.mxu0 0.0
  %314 = vmatpush1.msra.mxu0 %v286
  %315 = vmatprep.subr.mxu0 0.0
  %316 = vmatpush1.msra.mxu0 0.0
  %317 = vmatprep.subr.mxu0 0.0
  %318 = vmatpush1.msra.mxu0 0.0
  %319 = vmatprep.subr.mxu0 0.0
  %320 = vmatpush1.msra.mxu0 0.0
  %321 = vmatprep.subr.mxu0 0.0
  %322 = vmatpush1.msra.mxu0 0.0
  %323 = vmatprep.subr.mxu0 0.0
  %324 = vmatpush1.msra.mxu0 0.0
  %325 = vmatprep.subr.mxu0 0.0
  %326 = vmatpush1.msra.mxu0 0.0
  %327 = vmatprep.subr.mxu0 0.0
  %328 = vmatpush1.msra.mxu0 0.0
  %329 = vmatprep.subr.mxu0 0.0
  %330 = vmatpush1.msra.mxu0 0.0
  %331 = vmatprep.subr.mxu0 0.0
  %332 = vmatpush1.msra.mxu0 0.0
  %333 = vmatprep.subr.mxu0 0.0
  %334 = vmatpush1.msra.mxu0 0.0
  %335 = vmatprep.subr.mxu0 0.0
  %336 = vmatpush1.msra.mxu0 0.0
  %337 = vmatprep.subr.mxu0 0.0
  %338 = vmatpush1.msra.mxu0 0.0
  %339 = vmatprep.subr.mxu0 0.0
  %340 = vmatpush1.msra.mxu0 0.0
  %341 = vmatprep.subr.mxu0 0.0
  %342 = vmatpush1.msra.mxu0 0.0
  %343 = vmatprep.subr.mxu0 0.0
  %344 = vmatpush1.msra.mxu0 0.0
  %345 = vmatprep.subr.mxu0 0.0
  %346 = vmatpush1.msra.mxu0 0.0
  %347 = vmatprep.subr.mxu0 0.0
  %348 = vmatpush1.msra.mxu0 0.0
  %349 = vmatprep.subr.mxu0 0.0
  %350 = vmatpush1.msra.mxu0 0.0
  %351 = vmatprep.subr.mxu0 0.0
  %352 = vmatpush1.msra.mxu0 0.0
  %353 = vmatprep.subr.mxu0 0.0
  %354 = vmatpush1.msra.mxu0 0.0
  %355 = vmatprep.subr.mxu0 0.0
  %356 = vmatpush1.msra.mxu0 0.0
  %357 = vmatprep.subr.mxu0 0.0
  %358 = vmatpush1.msra.mxu0 0.0
  %359 = vmatprep.subr.mxu0 0.0
  %360 = vmatpush1.msra.mxu0 0.0
  %361 = vmatprep.subr.mxu0 0.0
  %362 = vmatpush1.msra.mxu0 0.0
  %363 = vmatprep.subr.mxu0 0.0
  %364 = vmatpush1.msra.mxu0 0.0
  %365 = vmatprep.subr.mxu0 0.0
  %366 = vmatpush1.msra.mxu0 0.0
  %367 = vmatprep.subr.mxu0 0.0
  %368 = vmatpush1.msra.mxu0 0.0
  %369 = vmatprep.subr.mxu0 0.0
  %370 = vmatpush1.msra.mxu0 0.0
  %371 = vmatprep.mubr.f32.mxu0 0.0
  %372 = vmatmul.mubr.f32.gmra.mrb[0].mxu0 %v302
  %v373 = vpop.f32.mrb[0].mxu0
  %v374 = vadd.f32 %v294, %v373
  %v375 = vpop.f32.mrb[0].mxu0
  %376 = vmatprep.mubr.f32.mxu0 0.0
  %377 = vmatmul.mubr.f32.gmra.mrb[0].mxu0 %v305
  %v378 = vpop.f32.mrb[0].mxu0
  %v379 = vadd.f32 %v299, %v378
  %v380 = vpop.f32.mrb[0].mxu0
  %381 = vdwg.mxu0
  %v382 = vxor.u32 %v374, 2147483648
  %v383 = vxor.u32 %v379, 2147483648
  %v384 = vmul.f32 %v382, 1.442695
  %v385 = vpow.pop %v384
  %v386 = vmul.f32 %v383, 1.442695
  %v387 = vpow.pop %v386
  %v388 = vadd.f32 %v385, 1.0
  %v389 = vadd.f32 %v387, 1.0
  %v390 = vrcp.pop %v388
  %v391 = vmul.f32 1.0, %v390
  %v392 = vrcp.pop %v389
  %v393 = vmul.f32 1.0, %v392
  %394 = vst.msk [vmem:[%s7] sm:$0xff] %vm55, %v391
  %395 = vst.msk [vmem:[%s7 + $0x8] sm:$0xff] %vm55, %v393
  // Predicated region
  $region30: #{tpu_custom_call.1} parent=0 // pred_check
    _
  $region31: #{tpu_custom_call.1} parent=0 // pred_check_branch
    %397 = sbr.rel (0) target = $region33
  $region32: #{tpu_custom_call.1} parent=0 // pred_region
    _
  $region33: #{tpu_custom_call.1} parent=0 // pred_fallthru
    _
  // Predicated region
  $region34: #{tpu_custom_call.1} parent=0 // pred_check
    _
  $region35: #{tpu_custom_call.1} parent=0 // pred_check_branch
    %399 = sbr.rel (0) target = $region37
  $region36: #{tpu_custom_call.1} parent=0 // pred_region
    _
  $region37: #{tpu_custom_call.1} parent=0 // pred_fallthru
    _

</llo_original>
